<compile_context>
chip_gen: v5e
topology: v5e:2x2
jax: 0.10.0
libtpu: 0.0.40
codegen_flags: <defaults>
</compile_context>

<pallas_src>
import functools
import math

import jax
import jax.numpy as jnp
from jax import lax
from jax.experimental import pallas as pl
from jax.experimental.pallas import tpu as pltpu


def _mha_alibi_kernel(x_ref, wqkv_ref, bqkv_ref, alibi_ref, wo_ref, bo_ref,
                      o_ref, qkv_scr, ohead_scr, *, num_heads, head_dim, q_tile):
    # x_ref:     (1, T, D)      bf16   full sequence for this batch element
    # wqkv_ref:  (D, 3*D)       bf16   packed W_qkv^T (head-major cols, q-scaled)
    # bqkv_ref:  (1, 3*D)       f32
    # alibi_ref: (1, Tq, T)     bf16   this head's bias tile
    # wo_ref:    (D, D)         bf16   W_o^T
    # bo_ref:    (1, D)         f32
    # o_ref:     (1, Tq, D)     output block (resident across the head axis)
    # qkv_scr:   (H, T, 3*dh)   bf16   hoisted QKV projection (per batch element)
    # ohead_scr: (H, Tq, dh)    bf16   per-head attention outputs for this q tile
    qi = pl.program_id(1)
    h = pl.program_id(2)
    dh = head_dim

    # ---- once per batch element: full-width fused QKV projection -------------
    @pl.when(jnp.logical_and(qi == 0, h == 0))
    def _():
        qkv = jnp.dot(x_ref[0], wqkv_ref[...],
                      preferred_element_type=jnp.float32) + bqkv_ref[...]
        qkv = qkv.astype(jnp.bfloat16)                           # (T, 3*D)
        for hh in range(num_heads):                              # static slices
            qkv_scr[hh] = qkv[:, hh * 3 * dh:(hh + 1) * 3 * dh]

    # ---- per (query tile, head) attention ------------------------------------
    head_ref = qkv_scr.at[h]                                     # (T, 3*dh) view
    kv_h = head_ref[...]                                         # (T, 3*dh) bf16
    k = kv_h[:, dh:2 * dh]                                       # (T, dh)
    v = kv_h[:, 2 * dh:3 * dh]                                   # (T, dh)

    t_total = kv_h.shape[0]
    if q_tile == t_total:                                        # trace-time branch
        q = kv_h[:, 0:dh]                                        # (Tq, dh)
    else:
        row0 = pl.multiple_of(qi * q_tile, q_tile)
        q = head_ref[pl.ds(row0, q_tile), :][:, 0:dh]            # (Tq, dh)

    # Scores: contract the dh axes directly (no materialized k.T).
    s = lax.dot_general(q, k, (((1,), (1,)), ((), ())),
                        preferred_element_type=jnp.float32)      # (Tq, T)
    s = s + alibi_ref[0].astype(jnp.float32)

    # Exact softmax in f32 (full key axis per step); normalization folded after PV.
    s = s - jnp.max(s, axis=-1, keepdims=True)
    p = jnp.exp(s)
    inv_l = pl.reciprocal(jnp.sum(p, axis=-1, keepdims=True), approx=True)
    o_h = jnp.dot(p.astype(jnp.bfloat16), v,
                  preferred_element_type=jnp.float32) * inv_l    # (Tq, dh) f32
    ohead_scr[h] = o_h.astype(jnp.bfloat16)

    # ---- single full-K output projection at the last head --------------------
    @pl.when(h == num_heads - 1)
    def _():
        o_all = jnp.concatenate([ohead_scr[i] for i in range(num_heads)],
                                axis=-1)                         # (Tq, D) bf16
        out = jnp.dot(o_all, wo_ref[...],
                      preferred_element_type=jnp.float32) + bo_ref[...]
        o_ref[0] = out.astype(o_ref.dtype)


def pack_mha_alibi_params(w_qkv, b_qkv, w_o, b_o, num_heads):
    """One-time weight repack (head-major QKV columns, 1/sqrt(dh) folded into q)."""
    three_d, d = w_qkv.shape
    dh = d // num_heads
    scale = 1.0 / math.sqrt(dh)
    w_r = w_qkv.reshape(num_heads, 3, dh, d)
    w_r = w_r.at[:, 0].multiply(scale)                 # fold scale into q weights
    b_r = b_qkv.reshape(num_heads, 3, dh)
    b_r = b_r.at[:, 0].multiply(scale)
    wqkv = jnp.transpose(w_r, (3, 0, 1, 2)).reshape(d, 3 * d).astype(jnp.bfloat16)
    bqkv = b_r.reshape(1, 3 * d).astype(jnp.float32)
    wo = jnp.transpose(w_o).astype(jnp.bfloat16)       # (D, D)
    bo = b_o.reshape(1, d).astype(jnp.float32)
    return dict(wqkv=wqkv, bqkv=bqkv, wo=wo, bo=bo)


def mha_alibi_forward(x, alibi, params, num_heads, *, q_tile=128):
    B, T, D = x.shape
    dh = D // num_heads
    Tq = q_tile if (T % q_tile == 0) else T            # query tile (full T if tiny)
    nq = T // Tq

    kernel = functools.partial(_mha_alibi_kernel, num_heads=num_heads,
                               head_dim=dh, q_tile=Tq)

    return pl.pallas_call(
        kernel,
        out_shape=jax.ShapeDtypeStruct((B, T, D), x.dtype),
        grid_spec=pltpu.PrefetchScalarGridSpec(
            num_scalar_prefetch=0,
            grid=(B, nq, num_heads),
            in_specs=[
                pl.BlockSpec((1, T, D), lambda b, qi, h: (b, 0, 0)),      # x
                pl.BlockSpec((D, 3 * D), lambda b, qi, h: (0, 0)),        # W_qkv^T
                pl.BlockSpec((1, 3 * D), lambda b, qi, h: (0, 0)),        # b_qkv
                pl.BlockSpec((1, Tq, T), lambda b, qi, h: (h, qi, 0)),    # alibi
                pl.BlockSpec((D, D), lambda b, qi, h: (0, 0)),            # W_o^T
                pl.BlockSpec((1, D), lambda b, qi, h: (0, 0)),            # b_o
            ],
            out_specs=pl.BlockSpec((1, Tq, D), lambda b, qi, h: (b, qi, 0)),
            scratch_shapes=[
                pltpu.VMEM((num_heads, T, 3 * dh), jnp.bfloat16),   # hoisted QKV
                pltpu.VMEM((num_heads, Tq, dh), jnp.bfloat16),      # per-head o
            ],
        ),
        compiler_params=pltpu.CompilerParams(
            # B parallel (core sharding); qi must stay "arbitrary" because the QKV
            # hoist is keyed on qi==0; H is the reduction axis (innermost).
            dimension_semantics=("parallel", "arbitrary", "arbitrary"),
            # Explicit scoped-VMEM budget; safe on v5e/v6e/v7x. Re-derive for big T.
            vmem_limit_bytes=32 * 1024 * 1024,
        ),
    )(x.astype(jnp.bfloat16), params["wqkv"], params["bqkv"],
      alibi.astype(jnp.bfloat16), params["wo"], params["bo"])


def multi_head_attention_alibi(x, alibi, w_qkv, b_qkv, w_o, b_o, num_heads):
    params = pack_mha_alibi_params(w_qkv, b_qkv, w_o, b_o, num_heads)
    return mha_alibi_forward(x, alibi, params, num_heads)


def reference(x, alibi, w_qkv, b_qkv, w_o, b_o, num_heads):
    """Pure-JAX (f32) replica of the PyTorch forward for validation."""
    B, T, D = x.shape
    H = num_heads
    dh = D // H
    qkv = x @ w_qkv.T + b_qkv                       # (B, T, 3D)
    qkv = qkv.reshape(B, T, H, 3, dh)
    q = jnp.transpose(qkv[:, :, :, 0, :], (0, 2, 1, 3))
    k = jnp.transpose(qkv[:, :, :, 1, :], (0, 2, 1, 3))
    v = jnp.transpose(qkv[:, :, :, 2, :], (0, 2, 1, 3))
    s = q @ jnp.swapaxes(k, 2, 3) / math.sqrt(dh) + alibi[None]
    p = jax.nn.softmax(s, axis=-1)
    o = p @ v
    o = jnp.transpose(o, (0, 2, 1, 3)).reshape(B, T, D)
    return o @ w_o.T + b_o


def make_alibi(num_heads, T):
    """Standard causal ALiBi bias: (H, T, T)."""
    slopes = jnp.array([2.0 ** (-8.0 * (h + 1) / num_heads)
                        for h in range(num_heads)], dtype=jnp.float32)
    i = jnp.arange(T)[:, None]
    j = jnp.arange(T)[None, :]
    dist = -(i - j).astype(jnp.float32)             # 0 on diag, negative below
    bias = slopes[:, None, None] * dist[None]
    causal = jnp.where(j <= i, 0.0, -1e9)
    return bias + causal[None]


if __name__ == "__main__":
    B, T, D, H = 2, 8, 32, 4

    key = jax.random.PRNGKey(0)
    kx, kw1, kb1, kw2, kb2 = jax.random.split(key, 5)

    x = jax.random.normal(kx, (B, T, D), dtype=jnp.float32)
    w_qkv = 0.02 * jax.random.normal(kw1, (3 * D, D), dtype=jnp.float32)
    b_qkv = 0.02 * jax.random.normal(kb1, (3 * D,), dtype=jnp.float32)
    w_o = 0.02 * jax.random.normal(kw2, (D, D), dtype=jnp.float32)
    b_o = 0.02 * jax.random.normal(kb2, (D,), dtype=jnp.float32)
    alibi = make_alibi(H, T)

    out = multi_head_attention_alibi(x, alibi, w_qkv, b_qkv, w_o, b_o, H)
    out = jax.block_until_ready(out)

    ref = reference(x, alibi, w_qkv, b_qkv, w_o, b_o, H)
    assert out.shape == (B, T, D)
    # bf16 matmuls / bf16 alibi / approx reciprocal vs f32 reference -> relaxed tol.
    assert jnp.allclose(out, ref, atol=2e-2, rtol=2e-2), "mismatch vs reference"
    print("KERNEL_OK")
</pallas_src>

<mosaic_0001>
module attributes {stable_mosaic.version = 11 : i64} {
  func.func @_mha_alibi_kernel(%arg0: i32, %arg1: i32, %arg2: i32, %arg3: memref<1x8x32xbf16, #tpu.memory_space<vmem>>, %arg4: memref<32x96xbf16, #tpu.memory_space<vmem>>, %arg5: memref<1x96xf32, #tpu.memory_space<vmem>>, %arg6: memref<1x8x8xbf16, #tpu.memory_space<vmem>>, %arg7: memref<32x32xbf16, #tpu.memory_space<vmem>>, %arg8: memref<1x32xf32, #tpu.memory_space<vmem>>, %arg9: memref<1x8x32xf32, #tpu.memory_space<vmem>>, %arg10: memref<4x8x24xbf16, #tpu.memory_space<vmem>>, %arg11: memref<4x8x8xbf16, #tpu.memory_space<vmem>>) attributes {dimension_semantics = [#tpu.dimension_semantics<parallel>, #tpu.dimension_semantics<arbitrary>, #tpu.dimension_semantics<arbitrary>], iteration_bounds = array<i64: 2, 1, 4>, scalar_prefetch = 0 : i64, scratch_operands = 2 : i64, tpu.core_type = #tpu.core_type<tc>, window_params = [{transform_indices = @transform_0, window_bounds = array<i64: 1, 8, 32>}, {pipeline_mode = #tpu.pipeline_mode<synchronous>, transform_indices = @transform_1, window_bounds = array<i64: 32, 96>}, {pipeline_mode = #tpu.pipeline_mode<synchronous>, transform_indices = @transform_2, window_bounds = array<i64: 1, 96>}, {transform_indices = @transform_3, window_bounds = array<i64: 1, 8, 8>}, {pipeline_mode = #tpu.pipeline_mode<synchronous>, transform_indices = @transform_4, window_bounds = array<i64: 32, 32>}, {pipeline_mode = #tpu.pipeline_mode<synchronous>, transform_indices = @transform_5, window_bounds = array<i64: 1, 32>}, {transform_indices = @transform_6, window_bounds = array<i64: 1, 8, 32>}]} {
    %c0_i32 = arith.constant 0 : i32
    %0 = arith.cmpi eq, %arg1, %c0_i32 : i32
    %c0_i32_0 = arith.constant 0 : i32
    %1 = arith.cmpi eq, %arg2, %c0_i32_0 : i32
    %2 = arith.andi %0, %1 : i1
    %3 = arith.extui %2 : i1 to i32
    %c0_i32_1 = arith.constant 0 : i32
    %4 = arith.cmpi ne, %3, %c0_i32_1 : i32
    scf.if %4 {
      %c0_12 = arith.constant 0 : index
      %c0_13 = arith.constant 0 : index
      %c0_14 = arith.constant 0 : index
      %36 = vector.load %arg3[%c0_12, %c0_13, %c0_14] : memref<1x8x32xbf16, #tpu.memory_space<vmem>>, vector<1x8x32xbf16>
      %37 = vector.shape_cast %36 : vector<1x8x32xbf16> to vector<8x32xbf16>
      %c0_15 = arith.constant 0 : index
      %c0_16 = arith.constant 0 : index
      %38 = vector.load %arg4[%c0_15, %c0_16] : memref<32x96xbf16, #tpu.memory_space<vmem>>, vector<32x96xbf16>
      %cst_17 = arith.constant dense<0.000000e+00> : vector<8x96xf32>
      %39 = tpu.matmul %37, %38, %cst_17 {dimension_numbers = #tpu.dot_dimension_numbers<[1], [0], [0], [1], [0, 0, 1, 1], [], []>} : vector<8x32xbf16>, vector<32x96xbf16>, vector<8x96xf32> -> vector<8x96xf32>
      %c0_18 = arith.constant 0 : index
      %c0_19 = arith.constant 0 : index
      %40 = vector.load %arg5[%c0_18, %c0_19] : memref<1x96xf32, #tpu.memory_space<vmem>>, vector<1x96xf32>
      %41 = vector.broadcast %40 : vector<1x96xf32> to vector<8x96xf32>
      %42 = arith.addf %39, %41 : vector<8x96xf32>
      %43 = arith.truncf %42 : vector<8x96xf32> to vector<8x96xbf16>
      %44 = vector.extract_strided_slice %43 {offsets = [0, 0], sizes = [8, 24], strides = [1, 1]} : vector<8x96xbf16> to vector<8x24xbf16>
      %c0_20 = arith.constant 0 : index
      %c0_21 = arith.constant 0 : index
      %c0_22 = arith.constant 0 : index
      %45 = vector.load %arg10[%c0_20, %c0_21, %c0_22] : memref<4x8x24xbf16, #tpu.memory_space<vmem>>, vector<1x8x24xbf16>
      %46 = vector.shape_cast %45 : vector<1x8x24xbf16> to vector<8x24xbf16>
      %47 = vector.shape_cast %44 : vector<8x24xbf16> to vector<1x8x24xbf16>
      tpu.vector_store %arg10[%c0_20, %c0_21, %c0_22], %47 {strides = array<i32>} : memref<4x8x24xbf16, #tpu.memory_space<vmem>>, vector<1x8x24xbf16>,
      %48 = vector.extract_strided_slice %43 {offsets = [0, 24], sizes = [8, 24], strides = [1, 1]} : vector<8x96xbf16> to vector<8x24xbf16>
      %c1 = arith.constant 1 : index
      %c0_23 = arith.constant 0 : index
      %c0_24 = arith.constant 0 : index
      %49 = vector.load %arg10[%c1, %c0_23, %c0_24] : memref<4x8x24xbf16, #tpu.memory_space<vmem>>, vector<1x8x24xbf16>
      %50 = vector.shape_cast %49 : vector<1x8x24xbf16> to vector<8x24xbf16>
      %51 = vector.shape_cast %48 : vector<8x24xbf16> to vector<1x8x24xbf16>
      tpu.vector_store %arg10[%c1, %c0_23, %c0_24], %51 {strides = array<i32>} : memref<4x8x24xbf16, #tpu.memory_space<vmem>>, vector<1x8x24xbf16>,
      %52 = vector.extract_strided_slice %43 {offsets = [0, 48], sizes = [8, 24], strides = [1, 1]} : vector<8x96xbf16> to vector<8x24xbf16>
      %c2 = arith.constant 2 : index
      %c0_25 = arith.constant 0 : index
      %c0_26 = arith.constant 0 : index
      %53 = vector.load %arg10[%c2, %c0_25, %c0_26] : memref<4x8x24xbf16, #tpu.memory_space<vmem>>, vector<1x8x24xbf16>
      %54 = vector.shape_cast %53 : vector<1x8x24xbf16> to vector<8x24xbf16>
      %55 = vector.shape_cast %52 : vector<8x24xbf16> to vector<1x8x24xbf16>
      tpu.vector_store %arg10[%c2, %c0_25, %c0_26], %55 {strides = array<i32>} : memref<4x8x24xbf16, #tpu.memory_space<vmem>>, vector<1x8x24xbf16>,
      %56 = vector.extract_strided_slice %43 {offsets = [0, 72], sizes = [8, 24], strides = [1, 1]} : vector<8x96xbf16> to vector<8x24xbf16>
      %c3 = arith.constant 3 : index
      %c0_27 = arith.constant 0 : index
      %c0_28 = arith.constant 0 : index
      %57 = vector.load %arg10[%c3, %c0_27, %c0_28] : memref<4x8x24xbf16, #tpu.memory_space<vmem>>, vector<1x8x24xbf16>
      %58 = vector.shape_cast %57 : vector<1x8x24xbf16> to vector<8x24xbf16>
      %59 = vector.shape_cast %56 : vector<8x24xbf16> to vector<1x8x24xbf16>
      tpu.vector_store %arg10[%c3, %c0_27, %c0_28], %59 {strides = array<i32>} : memref<4x8x24xbf16, #tpu.memory_space<vmem>>, vector<1x8x24xbf16>,
    } else {
    }
    %5 = arith.index_cast %arg2 : i32 to index
    %c0 = arith.constant 0 : index
    %c0_2 = arith.constant 0 : index
    %6 = vector.load %arg10[%5, %c0, %c0_2] : memref<4x8x24xbf16, #tpu.memory_space<vmem>>, vector<1x8x24xbf16>
    %7 = vector.shape_cast %6 : vector<1x8x24xbf16> to vector<8x24xbf16>
    %8 = vector.extract_strided_slice %7 {offsets = [0, 8], sizes = [8, 8], strides = [1, 1]} : vector<8x24xbf16> to vector<8x8xbf16>
    %9 = vector.extract_strided_slice %7 {offsets = [0, 16], sizes = [8, 8], strides = [1, 1]} : vector<8x24xbf16> to vector<8x8xbf16>
    %10 = vector.extract_strided_slice %7 {offsets = [0, 0], sizes = [8, 8], strides = [1, 1]} : vector<8x24xbf16> to vector<8x8xbf16>
    %cst = arith.constant dense<0.000000e+00> : vector<8x8xf32>
    %11 = tpu.matmul %10, %8, %cst {dimension_numbers = #tpu.dot_dimension_numbers<[1], [1], [0], [0], [0, 0, 1, 0], [], []>} : vector<8x8xbf16>, vector<8x8xbf16>, vector<8x8xf32> -> vector<8x8xf32>
    %c0_3 = arith.constant 0 : index
    %c0_4 = arith.constant 0 : index
    %c0_5 = arith.constant 0 : index
    %12 = vector.load %arg6[%c0_3, %c0_4, %c0_5] : memref<1x8x8xbf16, #tpu.memory_space<vmem>>, vector<1x8x8xbf16>
    %13 = vector.shape_cast %12 : vector<1x8x8xbf16> to vector<8x8xbf16>
    %14 = arith.extf %13 : vector<8x8xbf16> to vector<8x8xf32>
    %15 = arith.addf %11, %14 : vector<8x8xf32>
    %cst_6 = arith.constant dense<0xFF800000> : vector<8xf32>
    %16 = vector.multi_reduction <maximumf>, %15, %cst_6 [1] : vector<8x8xf32> to vector<8xf32>
    %17 = vector.shape_cast %16 : vector<8xf32> to vector<8x1xf32>
    %18 = vector.broadcast %17 : vector<8x1xf32> to vector<8x8xf32>
    %19 = arith.subf %15, %18 : vector<8x8xf32>
    %20 = math.exp %19 : vector<8x8xf32>
    %cst_7 = arith.constant dense<0.000000e+00> : vector<8xf32>
    %21 = vector.multi_reduction <add>, %20, %cst_7 [1] : vector<8x8xf32> to vector<8xf32>
    %22 = vector.shape_cast %21 : vector<8xf32> to vector<8x1xf32>
    %23 = tpu.reciprocal %22 {approx = true} : vector<8x1xf32> -> vector<8x1xf32>
    %24 = arith.truncf %20 : vector<8x8xf32> to vector<8x8xbf16>
    %cst_8 = arith.constant dense<0.000000e+00> : vector<8x8xf32>
    %25 = tpu.matmul %24, %9, %cst_8 {dimension_numbers = #tpu.dot_dimension_numbers<[1], [0], [0], [1], [0, 0, 1, 1], [], []>} : vector<8x8xbf16>, vector<8x8xbf16>, vector<8x8xf32> -> vector<8x8xf32>
    %26 = vector.broadcast %23 : vector<8x1xf32> to vector<8x8xf32>
    %27 = arith.mulf %25, %26 : vector<8x8xf32>
    %28 = arith.truncf %27 : vector<8x8xf32> to vector<8x8xbf16>
    %29 = arith.index_cast %arg2 : i32 to index
    %c0_9 = arith.constant 0 : index
    %c0_10 = arith.constant 0 : index
    %30 = vector.load %arg11[%29, %c0_9, %c0_10] : memref<4x8x8xbf16, #tpu.memory_space<vmem>>, vector<1x8x8xbf16>
    %31 = vector.shape_cast %30 : vector<1x8x8xbf16> to vector<8x8xbf16>
    %32 = vector.shape_cast %28 : vector<8x8xbf16> to vector<1x8x8xbf16>
    tpu.vector_store %arg11[%29, %c0_9, %c0_10], %32 {strides = array<i32>} : memref<4x8x8xbf16, #tpu.memory_space<vmem>>, vector<1x8x8xbf16>,
    %c3_i32 = arith.constant 3 : i32
    %33 = arith.cmpi eq, %arg2, %c3_i32 : i32
    %34 = arith.extui %33 : i1 to i32
    %c0_i32_11 = arith.constant 0 : i32
    %35 = arith.cmpi ne, %34, %c0_i32_11 : i32
    scf.if %35 {
      %c0_12 = arith.constant 0 : index
      %c0_13 = arith.constant 0 : index
      %c0_14 = arith.constant 0 : index
      %36 = vector.load %arg11[%c0_12, %c0_13, %c0_14] : memref<4x8x8xbf16, #tpu.memory_space<vmem>>, vector<1x8x8xbf16>
      %37 = vector.shape_cast %36 : vector<1x8x8xbf16> to vector<8x8xbf16>
      %c1 = arith.constant 1 : index
      %c0_15 = arith.constant 0 : index
      %c0_16 = arith.constant 0 : index
      %38 = vector.load %arg11[%c1, %c0_15, %c0_16] : memref<4x8x8xbf16, #tpu.memory_space<vmem>>, vector<1x8x8xbf16>
      %39 = vector.shape_cast %38 : vector<1x8x8xbf16> to vector<8x8xbf16>
      %c2 = arith.constant 2 : index
      %c0_17 = arith.constant 0 : index
      %c0_18 = arith.constant 0 : index
      %40 = vector.load %arg11[%c2, %c0_17, %c0_18] : memref<4x8x8xbf16, #tpu.memory_space<vmem>>, vector<1x8x8xbf16>
      %41 = vector.shape_cast %40 : vector<1x8x8xbf16> to vector<8x8xbf16>
      %c3 = arith.constant 3 : index
      %c0_19 = arith.constant 0 : index
      %c0_20 = arith.constant 0 : index
      %42 = vector.load %arg11[%c3, %c0_19, %c0_20] : memref<4x8x8xbf16, #tpu.memory_space<vmem>>, vector<1x8x8xbf16>
      %43 = vector.shape_cast %42 : vector<1x8x8xbf16> to vector<8x8xbf16>
      %44 = tpu.concatenate %37, %39, %41, %43 in 1 : vector<8x8xbf16>, vector<8x8xbf16>, vector<8x8xbf16>, vector<8x8xbf16> -> vector<8x32xbf16>
      %c0_21 = arith.constant 0 : index
      %c0_22 = arith.constant 0 : index
      %45 = vector.load %arg7[%c0_21, %c0_22] : memref<32x32xbf16, #tpu.memory_space<vmem>>, vector<32x32xbf16>
      %cst_23 = arith.constant dense<0.000000e+00> : vector<8x32xf32>
      %46 = tpu.matmul %44, %45, %cst_23 {dimension_numbers = #tpu.dot_dimension_numbers<[1], [0], [0], [1], [0, 0, 1, 1], [], []>} : vector<8x32xbf16>, vector<32x32xbf16>, vector<8x32xf32> -> vector<8x32xf32>
      %c0_24 = arith.constant 0 : index
      %c0_25 = arith.constant 0 : index
      %47 = vector.load %arg8[%c0_24, %c0_25] : memref<1x32xf32, #tpu.memory_space<vmem>>, vector<1x32xf32>
      %48 = vector.broadcast %47 : vector<1x32xf32> to vector<8x32xf32>
      %49 = arith.addf %46, %48 : vector<8x32xf32>
      %c0_26 = arith.constant 0 : index
      %c0_27 = arith.constant 0 : index
      %c0_28 = arith.constant 0 : index
      %50 = vector.load %arg9[%c0_26, %c0_27, %c0_28] : memref<1x8x32xf32, #tpu.memory_space<vmem>>, vector<1x8x32xf32>
      %51 = vector.shape_cast %50 : vector<1x8x32xf32> to vector<8x32xf32>
      %52 = vector.shape_cast %49 : vector<8x32xf32> to vector<1x8x32xf32>
      tpu.vector_store %arg9[%c0_26, %c0_27, %c0_28], %52 {strides = array<i32>} : memref<1x8x32xf32, #tpu.memory_space<vmem>>, vector<1x8x32xf32>,
    } else {
    }
    return
  }
  func.func @transform_0(%arg0: i32, %arg1: i32, %arg2: i32) -> (i32, i32, i32) {
    %c0_i32 = arith.constant 0 : i32
    %c0_i32_0 = arith.constant 0 : i32
    %c0_i32_1 = arith.constant 0 : i32
    return %arg0, %c0_i32, %c0_i32_0 : i32, i32, i32
  }
  func.func @transform_1(%arg0: i32, %arg1: i32, %arg2: i32) -> (i32, i32) {
    %c0_i32 = arith.constant 0 : i32
    %c0_i32_0 = arith.constant 0 : i32
    %c0_i32_1 = arith.constant 0 : i32
    return %c0_i32, %c0_i32_0 : i32, i32
  }
  func.func @transform_2(%arg0: i32, %arg1: i32, %arg2: i32) -> (i32, i32) {
    %c0_i32 = arith.constant 0 : i32
    %c0_i32_0 = arith.constant 0 : i32
    %c0_i32_1 = arith.constant 0 : i32
    return %c0_i32, %c0_i32_0 : i32, i32
  }
  func.func @transform_3(%arg0: i32, %arg1: i32, %arg2: i32) -> (i32, i32, i32) {
    %c0_i32 = arith.constant 0 : i32
    %c0_i32_0 = arith.constant 0 : i32
    return %arg2, %arg1, %c0_i32 : i32, i32, i32
  }
  func.func @transform_4(%arg0: i32, %arg1: i32, %arg2: i32) -> (i32, i32) {
    %c0_i32 = arith.constant 0 : i32
    %c0_i32_0 = arith.constant 0 : i32
    %c0_i32_1 = arith.constant 0 : i32
    return %c0_i32, %c0_i32_0 : i32, i32
  }
  func.func @transform_5(%arg0: i32, %arg1: i32, %arg2: i32) -> (i32, i32) {
    %c0_i32 = arith.constant 0 : i32
    %c0_i32_0 = arith.constant 0 : i32
    %c0_i32_1 = arith.constant 0 : i32
    return %c0_i32, %c0_i32_0 : i32, i32
  }
  func.func @transform_6(%arg0: i32, %arg1: i32, %arg2: i32) -> (i32, i32, i32) {
    %c0_i32 = arith.constant 0 : i32
    %c0_i32_0 = arith.constant 0 : i32
    return %arg0, %arg1, %c0_i32 : i32, i32, i32
  }
}

</mosaic_0001>

<llo_original>
// kernel: tpu_custom_call.1
$region0: #{tpu_custom_call.1}
  #allocation0 [shape = 'u32[]', space=smem, size = 0x4, offset = 0x4, fixed_abs, tag = 'smem constant byte address 0x4 - core index']
  #allocation1 [shape = 'u32[72,128]{1,0:T(1,128)}', space=vmem, size = 0x9000, scoped, tag = 'internal scratch']
  #allocation2 [shape = 'bf16[4,8,24]{2,1,0:T(8,128)(2,1)}', space=vmem, size = 0x2000, scoped, tag = 'scratch operand']
  #allocation3 [shape = 'bf16[4,8,8]{2,1,0:T(8,128)(2,1)}', space=vmem, size = 0x2000, scoped, tag = 'scratch operand']
  %s0 = inlined_call_operand.hbm [shape: bf16[2,8,32], index: 0, kind: input, shape index: {}]
  %s1 = inlined_call_operand.hbm [shape: bf16[32,96], index: 1, kind: input, shape index: {}]
  %s2 = inlined_call_operand.vmem [shape: f32[1,96], index: 2, kind: input, shape index: {}]
  %s3 = inlined_call_operand.hbm [shape: bf16[4,8,8], index: 3, kind: input, shape index: {}]
  %s4 = inlined_call_operand.hbm [shape: bf16[32,32], index: 4, kind: input, shape index: {}]
  %s5 = inlined_call_operand.vmem [shape: f32[1,32], index: 5, kind: input, shape index: {}]
  %s6 = inlined_call_operand.hbm [shape: f32[2,8,32], index: 6, kind: output, shape index: {}]
  %s7 = sld [smem:[#allocation0]]
  $region81: #{tpu_custom_call.1} parent=0
    _
  %s9 = ssub.s32 1, %s7
  %s10 = scalar_select 0, %s9, %s7
  $region1: #{tpu_custom_call.1} parent=0
    #allocation4 [shape = 'u8[4096]{0}', space=vmem, size = 0x1000, scoped, tag = 'input window, operand 0']
    #allocation5 [shape = 's32[2]{0}', space=sflag, size = 0x8, scoped, tag = 'scoped memory for tpu_custom_call.1']
    #allocation6 [shape = 's32[2]{0}', space=sflag, size = 0x8, scoped, tag = 'scoped memory for tpu_custom_call.1']
    #allocation7 [shape = 'u8[8192]{0}', space=vmem, size = 0x2000, scoped, tag = 'input window, operand 1, single buffered']
    #allocation8 [shape = 's32[1]{0}', space=sflag, size = 0x4, scoped, tag = 'scoped memory for tpu_custom_call.1']
    #allocation9 [shape = 'u8[4096]{0}', space=vmem, size = 0x1000, scoped, tag = 'input window, operand 3']
    #allocation10 [shape = 'u8[8192]{0}', space=vmem, size = 0x2000, scoped, tag = 'input window, operand 4, single buffered']
    #allocation11 [shape = 'u8[8192]{0}', space=vmem, size = 0x2000, scoped, tag = 'output window, operand 0']
    %11 = vsyncpa [#allocation5], 0
    %s12 = scalar_lea.sflag [#allocation5], 1
    %13 = vsyncpa %s12, 0
    %14 = vsyncpa [#allocation8], 0
    %15 = vsyncpa [#allocation6], 0
    %s16 = scalar_lea.sflag [#allocation6], 1
    %17 = vsyncpa %s16, 0
    loop: start=0, step=1, limit=10
    $region2: #{tpu_custom_call.1} parent=1 // loop_pre_header
      _
    $region3: #{tpu_custom_call.1} parent=1 // loop_header
      %s19 = sphi 0, %s23
      %p20 = scmp.ge.s32.totalorder %s19, 10
      %s26 = sphi 0, %s45
      %s27 = sphi 0, %s41
      %s28 = sphi 0, %s37
      %s29 = sphi 0, %s26
      %s30 = sphi 0, %s27
      %s31 = sphi 0, %s28
      %s32 = sphi 0, %s29
      %s33 = sphi 0, %s30
      %s34 = sphi 0, %s31
      %s48 = sphi 0, %s50
      %s51 = sphi 0, %s48
      %s52 = sphi 0, %s51
      %s68 = sphi 0, %s52
      %s72 = sphi 0, %s72
      %s74 = sphi 0, %s72
      %s75 = sphi 0, %s74
      %s89 = sphi 0, %s75
      %s93 = sphi 0, %s93
      %s95 = sphi 0, %s93
      %s96 = sphi 0, %s95
      %s110 = sphi 0, %s96
      %s118 = sphi 0, %s120
      %s121 = sphi 0, %s118
      %s122 = sphi 0, %s121
      %s138 = sphi 0, %s122
      %s142 = sphi 0, %s142
      %s144 = sphi 0, %s142
      %s145 = sphi 0, %s144
      %s159 = sphi 0, %s145
      %s163 = sphi 0, %s163
      %s165 = sphi 0, %s163
      %s166 = sphi 0, %s165
      %s180 = sphi 0, %s166
      %s188 = sphi 0, %s190
      %s191 = sphi 0, %s188
      %s192 = sphi 0, %s191
      %s208 = sphi 0, %s192
    $region4: #{tpu_custom_call.1} parent=1 // loop_header_branch
      %22 = sbr.rel (%p20) target = $region8
    $region5: #{tpu_custom_call.1} parent=1 // loop_body
      %s24 = ssub.s32 %s19, 1
      %s25 = ssub.s32 %s19, 2
      %s35 = sadd.s32 1, %s28
      %p36 = scmp.ge.s32.totalorder %s35, 4
      %s37 = scalar_select %p36, 0, %s35
      %s38 = sadd.s32 1, %s27
      %s39 = scalar_select %p36, %s38, %s27
      %p40 = scmp.ge.s32.totalorder %s39, 1
      %s41 = scalar_select %p40, 0, %s39
      %s42 = sadd.s32 1, %s26
      %s43 = scalar_select %p40, %s42, %s26
      %p44 = scmp.ge.s32.totalorder %s43, 2
      %s45 = scalar_select %p44, 0, %s43
      %s46 = ssub.s32 %s26, %s45
      %p47 = scmp.eq.s32.totalorder %s46, 0
      %s49 = sadd.s32 %s48, 1
      %s50 = scalar_select %p47, %s48, %s49
      %p53 = pneg %p47
      %p54 = scmp.eq.s32.totalorder %s19, 7
      %p55 = por %p53, %p54
      %p56 = scmp.ne.s32.totalorder %s48, %s51
      %p57 = scmp.eq.s32.totalorder %s19, 0
      %p58 = por %p56, %p57
      %p59 = scmp.ne.s32.totalorder %s48, %s51
      %p60 = scmp.eq.s32.totalorder %s24, 7
      %p61 = por %p59, %p60
      %p62 = scmp.ne.s32.totalorder %s51, %s52
      %p63 = scmp.eq.s32.totalorder %s24, 0
      %p64 = por %p62, %p63
      %p65 = scmp.ne.s32.totalorder %s51, %s52
      %p66 = scmp.eq.s32.totalorder %s25, 7
      %p67 = por %p65, %p66
      %p69 = scmp.ne.s32.totalorder %s52, %s68
      %p70 = scmp.eq.s32.totalorder %s25, 0
      %p71 = por %p69, %p70
      %s73 = sadd.s32 %s72, 1
      %p76 = scmp.eq.s32.totalorder %s19, 7
      %p77 = scmp.ne.s32.totalorder %s72, %s74
      %p78 = scmp.eq.s32.totalorder %s19, 0
      %p79 = por %p77, %p78
      %p80 = scmp.ne.s32.totalorder %s72, %s74
      %p81 = scmp.eq.s32.totalorder %s24, 7
      %p82 = por %p80, %p81
      %p83 = scmp.ne.s32.totalorder %s74, %s75
      %p84 = scmp.eq.s32.totalorder %s24, 0
      %p85 = por %p83, %p84
      %p86 = scmp.ne.s32.totalorder %s74, %s75
      %p87 = scmp.eq.s32.totalorder %s25, 7
      %p88 = por %p86, %p87
      %p90 = scmp.ne.s32.totalorder %s75, %s89
      %p91 = scmp.eq.s32.totalorder %s25, 0
      %p92 = por %p90, %p91
      %s94 = sadd.s32 %s93, 1
      %p97 = scmp.eq.s32.totalorder %s19, 7
      %p98 = scmp.ne.s32.totalorder %s93, %s95
      %p99 = scmp.eq.s32.totalorder %s19, 0
      %p100 = por %p98, %p99
      %p101 = scmp.ne.s32.totalorder %s93, %s95
      %p102 = scmp.eq.s32.totalorder %s24, 7
      %p103 = por %p101, %p102
      %p104 = scmp.ne.s32.totalorder %s95, %s96
      %p105 = scmp.eq.s32.totalorder %s24, 0
      %p106 = por %p104, %p105
      %p107 = scmp.ne.s32.totalorder %s95, %s96
      %p108 = scmp.eq.s32.totalorder %s25, 7
      %p109 = por %p107, %p108
      %p111 = scmp.ne.s32.totalorder %s96, %s110
      %p112 = scmp.eq.s32.totalorder %s25, 0
      %p113 = por %p111, %p112
      %s114 = ssub.s32 %s28, %s37
      %s115 = ssub.s32 %s27, %s41
      %s116 = sor.u32 %s114, %s115
      %p117 = scmp.eq.s32.totalorder %s116, 0
      %s119 = sadd.s32 %s118, 1
      %s120 = scalar_select %p117, %s118, %s119
      %p123 = pneg %p117
      %p124 = scmp.eq.s32.totalorder %s19, 7
      %p125 = por %p123, %p124
      %p126 = scmp.ne.s32.totalorder %s118, %s121
      %p127 = scmp.eq.s32.totalorder %s19, 0
      %p128 = por %p126, %p127
      %p129 = scmp.ne.s32.totalorder %s118, %s121
      %p130 = scmp.eq.s32.totalorder %s24, 7
      %p131 = por %p129, %p130
      %p132 = scmp.ne.s32.totalorder %s121, %s122
      %p133 = scmp.eq.s32.totalorder %s24, 0
      %p134 = por %p132, %p133
      %p135 = scmp.ne.s32.totalorder %s121, %s122
      %p136 = scmp.eq.s32.totalorder %s25, 7
      %p137 = por %p135, %p136
      %p139 = scmp.ne.s32.totalorder %s122, %s138
      %p140 = scmp.eq.s32.totalorder %s25, 0
      %p141 = por %p139, %p140
      %s143 = sadd.s32 %s142, 1
      %p146 = scmp.eq.s32.totalorder %s19, 7
      %p147 = scmp.ne.s32.totalorder %s142, %s144
      %p148 = scmp.eq.s32.totalorder %s19, 0
      %p149 = por %p147, %p148
      %p150 = scmp.ne.s32.totalorder %s142, %s144
      %p151 = scmp.eq.s32.totalorder %s24, 7
      %p152 = por %p150, %p151
      %p153 = scmp.ne.s32.totalorder %s144, %s145
      %p154 = scmp.eq.s32.totalorder %s24, 0
      %p155 = por %p153, %p154
      %p156 = scmp.ne.s32.totalorder %s144, %s145
      %p157 = scmp.eq.s32.totalorder %s25, 7
      %p158 = por %p156, %p157
      %p160 = scmp.ne.s32.totalorder %s145, %s159
      %p161 = scmp.eq.s32.totalorder %s25, 0
      %p162 = por %p160, %p161
      %s164 = sadd.s32 %s163, 1
      %p167 = scmp.eq.s32.totalorder %s19, 7
      %p168 = scmp.ne.s32.totalorder %s163, %s165
      %p169 = scmp.eq.s32.totalorder %s19, 0
      %p170 = por %p168, %p169
      %p171 = scmp.ne.s32.totalorder %s163, %s165
      %p172 = scmp.eq.s32.totalorder %s24, 7
      %p173 = por %p171, %p172
      %p174 = scmp.ne.s32.totalorder %s165, %s166
      %p175 = scmp.eq.s32.totalorder %s24, 0
      %p176 = por %p174, %p175
      %p177 = scmp.ne.s32.totalorder %s165, %s166
      %p178 = scmp.eq.s32.totalorder %s25, 7
      %p179 = por %p177, %p178
      %p181 = scmp.ne.s32.totalorder %s166, %s180
      %p182 = scmp.eq.s32.totalorder %s25, 0
      %p183 = por %p181, %p182
      %s184 = ssub.s32 %s26, %s45
      %s185 = ssub.s32 %s27, %s41
      %s186 = sor.u32 %s184, %s185
      %p187 = scmp.eq.s32.totalorder %s186, 0
      %s189 = sadd.s32 %s188, 1
      %s190 = scalar_select %p187, %s188, %s189
      %p193 = pneg %p187
      %p194 = scmp.eq.s32.totalorder %s19, 7
      %p195 = por %p193, %p194
      %p196 = scmp.ne.s32.totalorder %s188, %s191
      %p197 = scmp.eq.s32.totalorder %s19, 0
      %p198 = por %p196, %p197
      %p199 = scmp.ne.s32.totalorder %s188, %s191
      %p200 = scmp.eq.s32.totalorder %s24, 7
      %p201 = por %p199, %p200
      %p202 = scmp.ne.s32.totalorder %s191, %s192
      %p203 = scmp.eq.s32.totalorder %s24, 0
      %p204 = por %p202, %p203
      %p205 = scmp.ne.s32.totalorder %s191, %s192
      %p206 = scmp.eq.s32.totalorder %s25, 7
      %p207 = por %p205, %p206
      %p209 = scmp.ne.s32.totalorder %s192, %s208
      %p210 = scmp.eq.s32.totalorder %s25, 0
      %p211 = por %p209, %p210
      %p212 = scmp.le.s32.totalorder 1, %s19
      %p213 = scmp.lt.s32.totalorder %s19, 9
      %p214 = pnand %p212, %p213
      %p215 = pneg %p214
      // Predicated region
      $region9: #{tpu_custom_call.1} parent=5 // pred_check
        _
      $region10: #{tpu_custom_call.1} parent=5 // pred_check_branch
        %217 = sbr.rel (%p214) target = $region12
      $region11: #{tpu_custom_call.1} parent=5 // pred_region
        %s218 = ssub.s32 %s19, 1
        // Predicated region
        $region13: #{tpu_custom_call.1} parent=11 // pred_check
          %p219 = pneg %p85
        $region14: #{tpu_custom_call.1} parent=11 // pred_check_branch
          %221 = sbr.rel (%p219) target = $region16
        $region15: #{tpu_custom_call.1} parent=11 // pred_region
          %223 = vsyncadd [#allocation8], 0
          %s224 = sshll.u32 %s1, 4
          %s225 = int_to_ptr.hbm [resolvable:$true] %s224
          %s226 = sshll.u32 [#allocation7], 4
          %s227 = int_to_ptr.vmem [resolvable:$true] %s226
          %232 = dma.hbm_to_vmem [thread:$0]  %s225, 256, %s227, [#allocation8], 64, 64, 4
        $region16: #{tpu_custom_call.1} parent=11 // pred_fallthru
          _
        // Predicated region
        $region17: #{tpu_custom_call.1} parent=11 // pred_check
          %p233 = pneg %p106
        $region18: #{tpu_custom_call.1} parent=11 // pred_check_branch
          %235 = sbr.rel (%p233) target = $region20
        $region19: #{tpu_custom_call.1} parent=11 // pred_region
          _
        $region20: #{tpu_custom_call.1} parent=11 // pred_fallthru
          _
        // Predicated region
        $region21: #{tpu_custom_call.1} parent=11 // pred_check
          %p236 = pneg %p155
        $region22: #{tpu_custom_call.1} parent=11 // pred_check_branch
          %238 = sbr.rel (%p236) target = $region24
        $region23: #{tpu_custom_call.1} parent=11 // pred_region
          %240 = vsyncadd [#allocation8], 0
          %s241 = sshll.u32 %s4, 4
          %s242 = int_to_ptr.hbm [resolvable:$true] %s241
          %s243 = sshll.u32 [#allocation10], 4
          %s244 = int_to_ptr.vmem [resolvable:$true] %s243
          %249 = dma.hbm_to_vmem [thread:$0]  %s242, 256, %s244, [#allocation8], 64, 64, 4
        $region24: #{tpu_custom_call.1} parent=11 // pred_fallthru
          _
        // Predicated region
        $region25: #{tpu_custom_call.1} parent=11 // pred_check
          %p250 = pneg %p176
        $region26: #{tpu_custom_call.1} parent=11 // pred_check_branch
          %252 = sbr.rel (%p250) target = $region28
        $region27: #{tpu_custom_call.1} parent=11 // pred_region
          _
        $region28: #{tpu_custom_call.1} parent=11 // pred_fallthru
          _
      $region12: #{tpu_custom_call.1} parent=5 // pred_fallthru
        _
      %p253 = scmp.lt.s32.totalorder %s19, 8
      // Predicated region
      $region29: #{tpu_custom_call.1} parent=5 // pred_check
        %p254 = pneg %p253
      $region30: #{tpu_custom_call.1} parent=5 // pred_check_branch
        %256 = sbr.rel (%p254) target = $region32
      $region31: #{tpu_custom_call.1} parent=5 // pred_region
        // Predicated region
        $region33: #{tpu_custom_call.1} parent=31 // pred_check
          %p257 = pneg %p58
        $region34: #{tpu_custom_call.1} parent=31 // pred_check_branch
          %259 = sbr.rel (%p257) target = $region36
        $region35: #{tpu_custom_call.1} parent=31 // pred_region
          %s260 = sand.u32 %s19, 1
          %s261 = scalar_lea.sflag [#allocation5], %s260
          %s262 = sand.u32 %s48, 1
          %s263 = smul.addr %s262, 4
          %s264 = scalar_lea.vmem [#allocation4], %s263
          %266 = vsyncadd %s261, 0
          %s267 = smul.addr %s26, 4
          %s268 = scalar_lea.hbm %s0, %s267
          %s270 = sshll.u32 %s268, 4
          %s271 = int_to_ptr.hbm [resolvable:$true] %s270
          %s272 = sshll.u32 %s264, 4
          %s273 = int_to_ptr.vmem [resolvable:$true] %s272
          %275 = dma.hbm_to_vmem [thread:$0]  %s271, 64, %s273, %s261
        $region36: #{tpu_custom_call.1} parent=31 // pred_fallthru
          _
        // Predicated region
        $region37: #{tpu_custom_call.1} parent=31 // pred_check
          %p276 = pneg %p128
        $region38: #{tpu_custom_call.1} parent=31 // pred_check_branch
          %278 = sbr.rel (%p276) target = $region40
        $region39: #{tpu_custom_call.1} parent=31 // pred_region
          %s279 = sand.u32 %s19, 1
          %s280 = scalar_lea.sflag [#allocation5], %s279
          %s281 = sand.u32 %s118, 1
          %s282 = smul.addr %s281, 4
          %s283 = scalar_lea.vmem [#allocation9], %s282
          %285 = vsyncadd %s280, 0
          %s286 = sadd.s32 %s27, %s28
          %s287 = smul.addr %s286, 4
          %s288 = scalar_lea.hbm %s3, %s287
          %s290 = sshll.u32 %s288, 4
          %s291 = int_to_ptr.hbm [resolvable:$true] %s290
          %s292 = sshll.u32 %s283, 4
          %s293 = int_to_ptr.vmem [resolvable:$true] %s292
          %295 = dma.hbm_to_vmem [thread:$0]  %s291, 64, %s293, %s280
        $region40: #{tpu_custom_call.1} parent=31 // pred_fallthru
          _
      $region32: #{tpu_custom_call.1} parent=5 // pred_fallthru
        _
      %p296 = scmp.le.s32.totalorder 1, %s19
      %p297 = scmp.lt.s32.totalorder %s19, 9
      %p298 = pnand %p296, %p297
      %p299 = pneg %p298
      // Predicated region
      $region41: #{tpu_custom_call.1} parent=5 // pred_check
        _
      $region42: #{tpu_custom_call.1} parent=5 // pred_check_branch
        %301 = sbr.rel (%p298) target = $region44
      $region43: #{tpu_custom_call.1} parent=5 // pred_region
        %s302 = ssub.s32 %s19, 1
        %s303 = sand.u32 %s24, 1
        %s304 = scalar_lea.sflag [#allocation5], %s303
        %s305 = sand.u32 %s51, 1
        %s306 = smul.addr %s305, 4
        %s307 = scalar_lea.vmem [#allocation4], %s306
        // Predicated region
        $region45: #{tpu_custom_call.1} parent=43 // pred_check
          %p308 = pneg %p64
        $region46: #{tpu_custom_call.1} parent=43 // pred_check_branch
          %310 = sbr.rel (%p308) target = $region48
        $region47: #{tpu_custom_call.1} parent=43 // pred_region
          %312 = dma.done %s304, 64
        $region48: #{tpu_custom_call.1} parent=43 // pred_fallthru
          _
        // Predicated region
        $region49: #{tpu_custom_call.1} parent=43 // pred_check
          %p313 = pneg %p85
        $region50: #{tpu_custom_call.1} parent=43 // pred_check_branch
          %315 = sbr.rel (%p313) target = $region52
        $region51: #{tpu_custom_call.1} parent=43 // pred_region
          %317 = dma.done [#allocation8], 256
        $region52: #{tpu_custom_call.1} parent=43 // pred_fallthru
          _
        %s318 = sand.u32 %s24, 1
        %s319 = scalar_lea.sflag [#allocation5], %s318
        %s320 = sand.u32 %s121, 1
        %s321 = smul.addr %s320, 4
        %s322 = scalar_lea.vmem [#allocation9], %s321
        // Predicated region
        $region53: #{tpu_custom_call.1} parent=43 // pred_check
          %p323 = pneg %p134
        $region54: #{tpu_custom_call.1} parent=43 // pred_check_branch
          %325 = sbr.rel (%p323) target = $region56
        $region55: #{tpu_custom_call.1} parent=43 // pred_region
          %327 = dma.done %s319, 64
        $region56: #{tpu_custom_call.1} parent=43 // pred_fallthru
          _
        // Predicated region
        $region57: #{tpu_custom_call.1} parent=43 // pred_check
          %p328 = pneg %p155
        $region58: #{tpu_custom_call.1} parent=43 // pred_check_branch
          %330 = sbr.rel (%p328) target = $region60
        $region59: #{tpu_custom_call.1} parent=43 // pred_region
          %332 = dma.done [#allocation8], 256
        $region60: #{tpu_custom_call.1} parent=43 // pred_fallthru
          _
        %s333 = sand.u32 %s24, 1
        %s334 = scalar_lea.sflag [#allocation5], %s333
        %s335 = sand.u32 %s51, 1
        %s336 = smul.addr %s335, 4
        %s337 = scalar_lea.vmem [#allocation4], %s336
        %p338 = pneg %p64
        %p339 = pneg %p61
        %p340 = pneg %p85
        %p341 = pneg %p82
        %p342 = pneg %p106
        %p343 = pneg %p103
        %s344 = sand.u32 %s24, 1
        %s345 = scalar_lea.sflag [#allocation5], %s344
        %s346 = sand.u32 %s121, 1
        %s347 = smul.addr %s346, 4
        %s348 = scalar_lea.vmem [#allocation9], %s347
        %p349 = pneg %p134
        %p350 = pneg %p131
        %p351 = pneg %p155
        %p352 = pneg %p152
        %p353 = pneg %p176
        %p354 = pneg %p173
        %p355 = pneg %p204
        %p356 = pneg %p201
        %s357 = sand.u32 %s191, 1
        %s358 = scalar_lea.sflag [#allocation6], %s357
        %s359 = sand.u32 %s191, 1
        %s360 = smul.addr %s359, 8
        %s361 = scalar_lea.vmem [#allocation11], %s360
        %p363 = scmp.eq.s32.totalorder %s30, 0
        %p364 = scmp.eq.s32.totalorder %s31, 0
        %p365 = pnand %p363, %p364
        %p366 = pneg %p365
        // Predicated region
        $region61: #{tpu_custom_call.1} parent=43 // pred_check
          _
        $region62: #{tpu_custom_call.1} parent=43 // pred_check_branch
          %368 = sbr.rel (%p365) target = $region64
        $region63: #{tpu_custom_call.1} parent=43 // pred_region
          %v369 = vld [vmem:[%s307] sm:$0xf]
          %v370 = vld [vmem:[#allocation7] sm:$0xf]
          %v371 = vld [vmem:[#allocation7 + $0x4] sm:$0xf]
          %v372 = vld [vmem:[#allocation7 + $0x8] sm:$0xf]
          %v373 = vld [vmem:[#allocation7 + $0xc] sm:$0xf]
          %v374 = vld [vmem:[%s2] sm:$0x1]
          %v376 = vperm.slane %v374, 0
          %v382 = vunpack.c.l.b16 %v370
          %v383 = vunpack.c.l.b16 %v371
          %v384 = vunpack.c.l.b16 %v372
          %v385 = vunpack.c.l.b16 %v373
          %v386 = vpack.c.b16 %v383, %v382
          %v387 = vpack.c.b16 %v385, %v384
          %vm390 = vcmask 261120
          %v392 = vsel %vm390, %v369, 0
          %394 = vmatpush.bf16.msra.mxu0 0
          %395 = vmatpush.bf16.msra.mxu0 0
          %396 = vmatpush.bf16.msra.mxu0 0
          %397 = vmatpush.bf16.msra.mxu0 0
          %398 = vmatpush.bf16.msra.mxu0 0
          %399 = vmatpush.bf16.msra.mxu0 0
          %400 = vmatpush.bf16.msra.mxu0 %v387
          %401 = vmatpush.bf16.msra.mxu0 %v386
          %402 = vmatmul.bf16.gmra.mxu0 %v392
          %v403 = vpop.f32.mrf.mxu0
          %v404 = vadd.f32 %v376, %v403
          %v405 = vpop.f32.mrf.mxu0
          %406 = vdwg.mxu0
          %v407 = vpack.c.bf16 %v404, %v404
          %vm408 = vcmask 191488
          %409 = vst.msk [vmem:[#allocation2] sm:$0xf] %vm408, %v407
          %411 = vrot.lane.b32.xlu0 %v407, 104
          %v412 = vpop.permute.xlu0 %411
          %s414 = scalar_lea.vmem [#allocation2], 4
          %415 = vst.msk [vmem:[%s414] sm:$0xf] %vm408, %v412
          %416 = vrot.lane.b32.xlu0 %v407, 80
          %v417 = vpop.permute.xlu0 %416
          %s419 = scalar_lea.vmem [#allocation2], 8
          %420 = vst.msk [vmem:[%s419] sm:$0xf] %vm408, %v417
          %421 = vrot.lane.b32.xlu0 %v407, 56
          %v422 = vpop.permute.xlu0 %421
          %s424 = scalar_lea.vmem [#allocation2], 12
          %425 = vst.msk [vmem:[%s424] sm:$0xf] %vm408, %v422
        $region64: #{tpu_custom_call.1} parent=43 // pred_fallthru
          _
        %s426 = smul.addr %s31, 4
        %s427 = scalar_lea.vmem [#allocation2], %s426
        %v428 = vld [vmem:[%s427] sm:$0xf]
        %v429 = vld [vmem:[%s322] sm:$0xf]
        %v430 = vunpack.c.l.bf16 %v429
        %v432 = vunpack.c.l.b16 %v428
        %v433 = vpack.c.b16 %v432, %v432
        %434 = vrot.lane.b32.xlu0 %v433, 120
        %v435 = vpop.permute.xlu0 %434
        %vm436 = vcmask 64512
        %v438 = vsel %vm436, %v428, 0
        %v441 = vsel %vm436, %v435, 0
        %443 = vmatpush.bf16.xpose.msra.mxu0 0
        %444 = vmatpush.bf16.xpose.msra.mxu0 0
        %445 = vmatpush.bf16.xpose.msra.mxu0 0
        %446 = vmatpush.bf16.xpose.msra.mxu0 0
        %447 = vmatpush.bf16.xpose.msra.mxu0 0
        %448 = vmatpush.bf16.xpose.msra.mxu0 0
        %449 = vmatpush.bf16.xpose.msra.mxu0 0
        %450 = vmatpush.bf16.xpose.msra.mxu0 %v441
        %451 = vmatmul.bf16.gmra.mxu0 %v438
        %v452 = vpop.f32.mrf.mxu0
        %v453 = vadd.f32 %v430, %v452
        %v454 = vpop.f32.mrf.mxu0
        %455 = vdwg.mxu0
        %v456 = vsel %vm436, %v453, -inf
        %457 = vmax.xlane.f32.xlu0 %v456
        %v458 = vpop.xlane.xlu0 %457
        %v459 = vsub.f32 %v453, %v458
        %v460 = vmul.f32 %v459, 1.442695
        %v461 = vpow.pop %v460
        %v462 = vsel %vm436, %v461, 0.0
        %463 = vadd.xlane.f32.xlu0 %v462
        %v464 = vpop.xlane.xlu0 %463
        %v465 = vrcp.pop %v464
        %v466 = vpack.c.bf16 %v461, %v461
        %467 = vrot.lane.b32.xlu0 %v433, 112
        %v468 = vpop.permute.xlu0 %467
        %v470 = vsel %vm436, %v466, 0
        %vm472 = vcmask 1043456
        %v474 = vsel %vm472, %v468, 0
        %476 = vmatpush.bf16.msra.mxu0 0
        %477 = vmatpush.bf16.msra.mxu0 0
        %478 = vmatpush.bf16.msra.mxu0 0
        %479 = vmatpush.bf16.msra.mxu0 0
        %480 = vmatpush.bf16.msra.mxu0 0
        %481 = vmatpush.bf16.msra.mxu0 0
        %482 = vmatpush.bf16.msra.mxu0 0
        %483 = vmatpush.bf16.msra.mxu0 %v474
        %484 = vmatmul.bf16.gmra.mxu0 %v470
        %v485 = vpop.f32.mrf.mxu0
        %v486 = vadd.f32 0.0, %v485
        %v487 = vpop.f32.mrf.mxu0
        %488 = vdwg.mxu0
        %v489 = vmul.f32 %v486, %v465
        %v490 = vpack.c.bf16 %v489, %v489
        %s491 = smul.addr %s31, 4
        %s492 = scalar_lea.vmem [#allocation3], %s491
        %vm493 = vcmask 60416
        %494 = vst.msk [vmem:[%s492] sm:$0xf] %vm493, %v490
        %p495 = scmp.eq.s32.totalorder %s31, 3
        // Predicated region
        $region65: #{tpu_custom_call.1} parent=43 // pred_check
          %p496 = pneg %p495
        $region66: #{tpu_custom_call.1} parent=43 // pred_check_branch
          %498 = sbr.rel (%p496) target = $region68
        $region67: #{tpu_custom_call.1} parent=43 // pred_region
          %v499 = vld [vmem:[#allocation3] sm:$0xf]
          %s500 = scalar_lea.vmem [#allocation3], 4
          %v501 = vld [vmem:[%s500] sm:$0xf]
          %s502 = scalar_lea.vmem [#allocation3], 8
          %v503 = vld [vmem:[%s502] sm:$0xf]
          %s504 = scalar_lea.vmem [#allocation3], 12
          %v505 = vld [vmem:[%s504] sm:$0xf]
          %v507 = vunpack.c.l.b16 %v501
          %v508 = vpack.c.b16 %v507, %v507
          %509 = vrot.lane.b32.xlu0 %v508, 8
          %v510 = vpop.permute.xlu0 %509
          %v512 = vunpack.c.l.b16 %v503
          %v513 = vpack.c.b16 %v512, %v512
          %514 = vrot.lane.b32.xlu0 %v513, 16
          %v515 = vpop.permute.xlu0 %514
          %v517 = vunpack.c.l.b16 %v505
          %v518 = vpack.c.b16 %v517, %v517
          %519 = vrot.lane.b32.xlu0 %v518, 24
          %v520 = vpop.permute.xlu0 %519
          %v523 = vsel %vm436, %v499, %v510
          %vm524 = vcmask 130048
          %v526 = vsel %vm524, %v523, %v515
          %vm527 = vcmask 195584
          %v529 = vsel %vm527, %v526, %v520
          %v530 = vld [vmem:[#allocation10] sm:$0xf]
          %v531 = vld [vmem:[#allocation10 + $0x4] sm:$0xf]
          %v532 = vld [vmem:[#allocation10 + $0x8] sm:$0xf]
          %v533 = vld [vmem:[#allocation10 + $0xc] sm:$0xf]
          %v534 = vld [vmem:[%s5] sm:$0x1]
          %v536 = vperm.slane %v534, 0
          %v542 = vunpack.c.l.b16 %v530
          %v543 = vunpack.c.l.b16 %v531
          %v544 = vunpack.c.l.b16 %v532
          %v545 = vunpack.c.l.b16 %v533
          %v546 = vpack.c.b16 %v543, %v542
          %v547 = vpack.c.b16 %v545, %v544
          %vm550 = vcmask 261120
          %v551 = vsel %vm550, %v529, 0
          %553 = vmatpush.bf16.msra.mxu0 0
          %554 = vmatpush.bf16.msra.mxu0 0
          %555 = vmatpush.bf16.msra.mxu0 0
          %556 = vmatpush.bf16.msra.mxu0 0
          %557 = vmatpush.bf16.msra.mxu0 0
          %558 = vmatpush.bf16.msra.mxu0 0
          %559 = vmatpush.bf16.msra.mxu0 %v547
          %560 = vmatpush.bf16.msra.mxu0 %v546
          %561 = vmatmul.bf16.gmra.mxu0 %v551
          %v562 = vpop.f32.mrf.mxu0
          %v563 = vadd.f32 %v536, %v562
          %v564 = vpop.f32.mrf.mxu0
          %565 = vdwg.mxu0
          %566 = vst.msk [vmem:[%s361] sm:$0xff] %vm550, %v563
        $region68: #{tpu_custom_call.1} parent=43 // pred_fallthru
          _
        %s567 = sand.u32 %s191, 1
        %s568 = scalar_lea.sflag [#allocation6], %s567
        %s569 = sand.u32 %s191, 1
        %s570 = smul.addr %s569, 8
        %s571 = scalar_lea.vmem [#allocation11], %s570
        // Predicated region
        $region69: #{tpu_custom_call.1} parent=43 // pred_check
          %p572 = pneg %p201
        $region70: #{tpu_custom_call.1} parent=43 // pred_check_branch
          %574 = sbr.rel (%p572) target = $region72
        $region71: #{tpu_custom_call.1} parent=43 // pred_region
          %576 = vsyncadd %s568, 0
          %s577 = sadd.s32 %s30, %s29
          %s578 = smul.addr %s577, 8
          %s579 = scalar_lea.hbm %s6, %s578
          %s581 = sshll.u32 %s571, 4
          %s582 = int_to_ptr.vmem [resolvable:$true] %s581
          %s583 = sshll.u32 %s579, 4
          %s584 = int_to_ptr.hbm [resolvable:$true] %s583
          %586 = dma.vmem_to_hbm [thread:$0]  %s582, 128, %s584, %s568
        $region72: #{tpu_custom_call.1} parent=43 // pred_fallthru
          _
      $region44: #{tpu_custom_call.1} parent=5 // pred_fallthru
        _
      %p587 = scmp.le.s32.totalorder 2, %s19
      // Predicated region
      $region73: #{tpu_custom_call.1} parent=5 // pred_check
        %p588 = pneg %p587
      $region74: #{tpu_custom_call.1} parent=5 // pred_check_branch
        %590 = sbr.rel (%p588) target = $region76
      $region75: #{tpu_custom_call.1} parent=5 // pred_region
        %s591 = ssub.s32 %s19, 2
        // Predicated region
        $region77: #{tpu_custom_call.1} parent=75 // pred_check
          %p592 = pneg %p207
        $region78: #{tpu_custom_call.1} parent=75 // pred_check_branch
          %594 = sbr.rel (%p592) target = $region80
        $region79: #{tpu_custom_call.1} parent=75 // pred_region
          %s595 = sand.u32 %s192, 1
          %s596 = scalar_lea.sflag [#allocation6], %s595
          %s597 = sand.u32 %s192, 1
          %s598 = smul.addr %s597, 8
          %s599 = scalar_lea.vmem [#allocation11], %s598
          %601 = dma.done %s596, 128
        $region80: #{tpu_custom_call.1} parent=75 // pred_fallthru
          _
      $region76: #{tpu_custom_call.1} parent=5 // pred_fallthru
        _
    $region6: #{tpu_custom_call.1} parent=1 // loop_footer
      %s23 = sadd.s32 1, %s19
    $region7: #{tpu_custom_call.1} parent=1 // loop_footer_branch
      %18 = sbr.rel target = $region3
    $region8: #{tpu_custom_call.1} parent=1 // loop_exit
      _
    %602 = vsyncpa [#allocation5], 1
    %s603 = scalar_lea.sflag [#allocation5], 1
    %604 = vsyncpa %s603, 1
    %605 = vsyncpa [#allocation8], 1
    %606 = vsyncpa [#allocation6], 1
    %s607 = scalar_lea.sflag [#allocation6], 1
    %608 = vsyncpa %s607, 1

</llo_original>
